<compile_context>
chip_gen: v6e
topology: v6e:2x2x1
jax: 0.10.0
libtpu: 0.0.40
codegen_flags: <defaults>
</compile_context>

<pallas_src>
import jax
import jax.numpy as jnp
from jax import lax
from jax.experimental import pallas as pl
from jax.experimental.pallas import tpu as pltpu


LANES = 128
SUBLANES = 8
# ~1 MiB f32 per block (2048 * 128 * 4 B). Multiple of 32 so bf16/int8 sublane
# tiling is also legal. Default double-buffering => ~4 MiB VMEM for in + out.
MAX_TILE_ROWS = 2048


def _msigmoid_kernel(x_ref, o_ref):
    x = x_ref[...].astype(jnp.float32)
    # sqrt(sigmoid(x) * clamp(x+3, 0, 6)/6) == sqrt(gate) * rsqrt(1 + exp(-x))
    gate = jnp.clip(x + 3.0, 0.0, 6.0) * (1.0 / 6.0)
    y = jnp.sqrt(gate) * lax.rsqrt(1.0 + jnp.exp(-x))
    o_ref[...] = y.astype(o_ref.dtype)


def msigmoid_approx(x, *, donate_input=False):
    """Elementwise sqrt(sigmoid(x) * clamp(x+3, 0, 6)/6) via a Pallas TPU kernel."""
    orig_shape = x.shape
    orig_dtype = x.dtype

    flat = x.reshape(-1)
    n = flat.shape[0]

    # Pad only to one layout tile of the dtype (8 sublanes for f32, 16 for
    # bf16, 32 for int8) x 128 lanes -- at most a few KiB, and a no-op (no HBM
    # copy) for the common aligned-activation case.
    itemsize = jnp.dtype(orig_dtype).itemsize
    sublane_pack = SUBLANES * max(1, 4 // itemsize)
    min_tile = sublane_pack * LANES
    n_pad = (-n) % min_tile
    if n_pad:
        flat = jnp.pad(flat, (0, n_pad))
    rows = flat.shape[0] // LANES
    x2d = flat.reshape(rows, LANES)

    # Big blocks amortise per-grid-step overhead; rows is a multiple of
    # sublane_pack, so tile_rows is too. Ragged last block (rows % tile_rows)
    # is handled by Pallas (reads padded, writes masked).
    tile_rows = min(MAX_TILE_ROWS, rows)
    grid = (pl.cdiv(rows, tile_rows),)

    kwargs = {}
    if donate_input:
        # Reuse the input HBM buffer for the output (activation in-place).
        kwargs["input_output_aliases"] = {0: 0}

    out2d = pl.pallas_call(
        _msigmoid_kernel,
        out_shape=jax.ShapeDtypeStruct((rows, LANES), orig_dtype),
        grid_spec=pltpu.PrefetchScalarGridSpec(
            num_scalar_prefetch=0,
            grid=grid,
            in_specs=[pl.BlockSpec((tile_rows, LANES), lambda i: (i, 0))],
            out_specs=pl.BlockSpec((tile_rows, LANES), lambda i: (i, 0)),
        ),
        compiler_params=pltpu.CompilerParams(
            dimension_semantics=("parallel",),
        ),
        **kwargs,
    )(x2d)

    out_flat = out2d.reshape(-1)
    if n_pad:
        out_flat = out_flat[:n]
    return out_flat.reshape(orig_shape)


def _reference(x):
    xf = x.astype(jnp.float32)
    return jnp.sqrt(
        jax.nn.sigmoid(xf) * jnp.clip(xf + 3.0, 0.0, 6.0) / 6.0
    ).astype(x.dtype)


if __name__ == "__main__":
    key = jax.random.PRNGKey(0)

    # NCHW input, small shape consistent with a detector-head activation.
    x = jax.random.normal(key, (2, 4, 16, 16), dtype=jnp.float32) * 3.0
    y = jax.block_until_ready(msigmoid_approx(x))
    y_ref = _reference(x)
    assert y.shape == x.shape and y.dtype == x.dtype
    assert jnp.max(jnp.abs(y - y_ref)) < 1e-5

    # Non-lane-aligned shape to exercise the (tiny) padding / ragged path.
    x2 = jax.random.normal(jax.random.PRNGKey(1), (2, 3, 7, 5), dtype=jnp.float32) * 3.0
    y2 = jax.block_until_ready(msigmoid_approx(x2))
    y2_ref = _reference(x2)
    assert y2.shape == x2.shape and jnp.max(jnp.abs(y2 - y2_ref)) < 1e-5

    print("KERNEL_OK")
</pallas_src>

<mosaic_0001>
module attributes {stable_mosaic.version = 11 : i64} {
  func.func @_msigmoid_kernel(%arg0: i32, %arg1: memref<16x128xf32, #tpu.memory_space<vmem>>, %arg2: memref<16x128xf32, #tpu.memory_space<vmem>>) attributes {dimension_semantics = [#tpu.dimension_semantics<parallel>], iteration_bounds = array<i64: 1>, scalar_prefetch = 0 : i64, scratch_operands = 0 : i64, tpu.core_type = #tpu.core_type<tc>, window_params = [{transform_indices = @transform_0, window_bounds = array<i64: 16, 128>}, {transform_indices = @transform_1, window_bounds = array<i64: 16, 128>}]} {
    %c0 = arith.constant 0 : index
    %c0_0 = arith.constant 0 : index
    %0 = vector.load %arg1[%c0, %c0_0] : memref<16x128xf32, #tpu.memory_space<vmem>>, vector<16x128xf32>
    %cst = arith.constant 3.000000e+00 : f32
    %1 = vector.broadcast %cst : f32 to vector<16x128xf32>
    %2 = arith.addf %0, %1 : vector<16x128xf32>
    %cst_1 = arith.constant 0.000000e+00 : f32
    %cst_2 = arith.constant 6.000000e+00 : f32
    %3 = vector.broadcast %cst_1 : f32 to vector<16x128xf32>
    %4 = arith.maximumf %3, %2 : vector<16x128xf32>
    %5 = vector.broadcast %cst_2 : f32 to vector<16x128xf32>
    %6 = arith.minimumf %5, %4 : vector<16x128xf32>
    %cst_3 = arith.constant 0.166666672 : f32
    %7 = vector.broadcast %cst_3 : f32 to vector<16x128xf32>
    %8 = arith.mulf %6, %7 : vector<16x128xf32>
    %9 = math.sqrt %8 : vector<16x128xf32>
    %cst_4 = arith.constant 0.000000e+00 : f32
    %10 = vector.broadcast %cst_4 : f32 to vector<16x128xf32>
    %11 = arith.subf %10, %0 : vector<16x128xf32>
    %12 = math.exp %11 : vector<16x128xf32>
    %cst_5 = arith.constant 1.000000e+00 : f32
    %13 = vector.broadcast %cst_5 : f32 to vector<16x128xf32>
    %14 = arith.addf %13, %12 : vector<16x128xf32>
    %15 = math.rsqrt %14 : vector<16x128xf32>
    %16 = arith.mulf %9, %15 : vector<16x128xf32>
    %c0_6 = arith.constant 0 : index
    %c0_7 = arith.constant 0 : index
    %17 = vector.load %arg2[%c0_6, %c0_7] : memref<16x128xf32, #tpu.memory_space<vmem>>, vector<16x128xf32>
    tpu.vector_store %arg2[%c0_6, %c0_7], %16 {strides = array<i32>} : memref<16x128xf32, #tpu.memory_space<vmem>>, vector<16x128xf32>,
    return
  }
  func.func @transform_0(%arg0: i32) -> (i32, i32) {
    %c0_i32 = arith.constant 0 : i32
    %c0_i32_0 = arith.constant 0 : i32
    return %arg0, %c0_i32 : i32, i32
  }
  func.func @transform_1(%arg0: i32) -> (i32, i32) {
    %c0_i32 = arith.constant 0 : i32
    %c0_i32_0 = arith.constant 0 : i32
    return %arg0, %c0_i32 : i32, i32
  }
}

</mosaic_0001>

<llo_original>
// kernel: tpu_custom_call.1
$region0: #{tpu_custom_call.1}
  #allocation0 [shape = 'u32[]', space=smem, size = 0x4, offset = 0x4, fixed_abs, tag = 'smem constant byte address 0x4 - core index']
  #allocation1 [shape = 'u32[144,128]{1,0:T(1,128)}', space=vmem, size = 0x12000, scoped, tag = 'internal scratch']
  %s0 = inlined_call_operand.hbm [shape: f32[16,128], index: 0, kind: input, shape index: {}]
  %s1 = inlined_call_operand.hbm [shape: f32[16,128], index: 1, kind: output, shape index: {}]
  %s2 = sld [smem:[#allocation0]]
  $region18: #{tpu_custom_call.1} parent=0
    _
  %s4 = ssub.s32 1, %s2
  %s5 = scalar_select 0, %s4, %s2
  $region1: #{tpu_custom_call.1} parent=0
    #allocation2 [shape = 'u8[8192]{0}', space=vmem, size = 0x2000, scoped, tag = 'input window, operand 0, single buffered']
    #allocation3 [shape = 's32[1]{0}', space=sflag, size = 0x4, scoped, tag = 'scoped memory for tpu_custom_call.1']
    #allocation4 [shape = 's32[1]{0}', space=sflag, size = 0x4, scoped, tag = 'scoped memory for tpu_custom_call.1']
    #allocation5 [shape = 'u8[8192]{0}', space=vmem, size = 0x2000, scoped, tag = 'output window, operand 0, single buffered']
    %6 = vsyncpa [#allocation3], 0
    %7 = vsyncpa [#allocation4], 0
    // Predicated region
    $region2: #{tpu_custom_call.1} parent=1 // pred_check
      _
    $region3: #{tpu_custom_call.1} parent=1 // pred_check_branch
      %9 = sbr.rel (0) target = $region5
    $region4: #{tpu_custom_call.1} parent=1 // pred_region
      %s11 = ssub.s32 256, 256
      %12 = vsyncadd [#allocation3], %s11
      %s13 = sshll.u32 [#allocation2], 4
      %s14 = int_to_ptr.vmem [resolvable:$true] %s13
      %19 = dma.hbm_to_vmem [thread:$0]  %s0, 256, %s14, [#allocation3], 128, 128, 8
    $region5: #{tpu_custom_call.1} parent=1 // pred_fallthru
      _
    // Predicated region
    $region6: #{tpu_custom_call.1} parent=1 // pred_check
      _
    $region7: #{tpu_custom_call.1} parent=1 // pred_check_branch
      %21 = sbr.rel (0) target = $region9
    $region8: #{tpu_custom_call.1} parent=1 // pred_region
      %22 = dma.done [#allocation3], 256
    $region9: #{tpu_custom_call.1} parent=1 // pred_fallthru
      _
    %v23 = vld [vmem:[#allocation2] sm:$0xff]
    %v24 = vld [vmem:[#allocation2 + $0x8] sm:$0xff]
    %v25 = vadd.f32 %v23, 3.0
    %v26 = vadd.f32 %v24, 3.0
    %v27 = vmax.f32 %v25, 0.0
    %v28 = vmax.f32 %v26, 0.0
    %v29 = vmin.f32 %v27, 6.0
    %v30 = vmin.f32 %v28, 6.0
    %v31 = vmul.f32 %v29, 0.16666667
    %v32 = vmul.f32 %v30, 0.16666667
    %v33 = vrsqrt.pop %v31
    %v34 = vmul.f32 %v31, %v33
    %vm35 = vcmp.eq.f32.partialorder %v31, inf
    %v36 = vsel %vm35, %v31, %v34
    %vm37 = vcmp.eq.f32.partialorder %v31, 0.0
    %v38 = vand.u32 %v31, 2147483648
    %v39 = vsel %vm37, %v38, %v36
    %v40 = vrsqrt.pop %v32
    %v41 = vmul.f32 %v32, %v40
    %vm42 = vcmp.eq.f32.partialorder %v32, inf
    %v43 = vsel %vm42, %v32, %v41
    %vm44 = vcmp.eq.f32.partialorder %v32, 0.0
    %v45 = vand.u32 %v32, 2147483648
    %v46 = vsel %vm44, %v45, %v43
    %v47 = vsub.f32 0.0, %v23
    %v48 = vsub.f32 0.0, %v24
    %v49 = vmul.f32 %v47, 1.442695
    %v50 = vpow.pop %v49
    %v51 = vmul.f32 %v48, 1.442695
    %v52 = vpow.pop %v51
    %v53 = vadd.f32 %v50, 1.0
    %v54 = vadd.f32 %v52, 1.0
    %v55 = vrsqrt.pop %v53
    %v56 = vrsqrt.pop %v54
    %v57 = vmul.f32 %v39, %v55
    %v58 = vmul.f32 %v46, %v56
    %59 = vst [vmem:[#allocation5] sm:$0xff] %v57
    %60 = vst [vmem:[#allocation5 + $0x8] sm:$0xff] %v58
    // Predicated region
    $region10: #{tpu_custom_call.1} parent=1 // pred_check
      _
    $region11: #{tpu_custom_call.1} parent=1 // pred_check_branch
      %62 = sbr.rel (0) target = $region13
    $region12: #{tpu_custom_call.1} parent=1 // pred_region
      %s64 = ssub.s32 256, 256
      %65 = vsyncadd [#allocation4], %s64
      %s66 = sshll.u32 [#allocation5], 4
      %s67 = int_to_ptr.vmem [resolvable:$true] %s66
      %72 = dma.vmem_to_hbm [thread:$0]  %s67, 256, %s1, [#allocation4], 128, 128, 8
    $region13: #{tpu_custom_call.1} parent=1 // pred_fallthru
      _
    // Predicated region
    $region14: #{tpu_custom_call.1} parent=1 // pred_check
      _
    $region15: #{tpu_custom_call.1} parent=1 // pred_check_branch
      %74 = sbr.rel (0) target = $region17
    $region16: #{tpu_custom_call.1} parent=1 // pred_region
      %75 = dma.done [#allocation4], 256
    $region17: #{tpu_custom_call.1} parent=1 // pred_fallthru
      _
    %76 = vsyncpa [#allocation3], 1
    %77 = vsyncpa [#allocation4], 1

</llo_original>
